<compile_context>
chip_gen: v7x
topology: tpu7x:2x2x1
jax: 0.10.0
libtpu: 0.0.40
codegen_flags: <defaults>
</compile_context>

<pallas_src>
import math

import numpy as np
import jax
import jax.numpy as jnp
from jax.experimental import pallas as pl
from jax.experimental.pallas import tpu as pltpu


def make_positional_encoding(d_model: int, max_len: int = 5000,
                             dtype=jnp.float32) -> jnp.ndarray:
    """Deterministic sinusoidal table, shape (1, max_len, d_model).

    Pass dtype=jnp.bfloat16 at init for bf16 models so the per-call cast is
    hoisted out of the forward pass entirely.  NOTE: PyTorch keeps pe in fp32
    and lets the add promote; casting the table to bf16 differs by ~1 ulp.
    """
    position = np.arange(0, max_len, dtype=np.float32)[:, None]          # (max_len, 1)
    div_term = np.exp(
        np.arange(0, d_model, 2, dtype=np.float32) * (-np.log(10000.0) / d_model)
    )                                                                     # (d_model/2,)
    pe = np.zeros((1, max_len, d_model), dtype=np.float32)
    pe[0, :, 0::2] = np.sin(position * div_term)
    pe[0, :, 1::2] = np.cos(position * div_term)
    return jnp.asarray(pe, dtype=dtype)


def _chip_config():
    """Generation-aware tuning knobs (safe fallback when detection fails)."""
    kind = ""
    try:
        kind = jax.devices()[0].device_kind.lower()
    except Exception:
        pass
    if "v7" in kind or "tpu7" in kind:
        # v7x: 64 MiB physical VMEM per TC -> cap the buffered budget; fast HBM
        # makes per-step overhead dominant -> bigger per-step blocks, higher
        # XLA-fallback threshold, and keep >= 2 grid steps for the 2nd core.
        return {"budget": 24 << 20, "vmem_limit": 32 << 20,
                "min_pallas": 1 << 20, "target_block": 4 << 20,
                "prefer_multi_step": True}
    if "v6" in kind or "tpu6" in kind:
        # v6e: 32 MiB scoped default / 128 MiB physical -> spend headroom on bt.
        return {"budget": 24 << 20, "vmem_limit": 28 << 20,
                "min_pallas": 32768, "target_block": 2 << 20,
                "prefer_multi_step": False}
    # v5e / unknown: 16 MiB scoped-VMEM default -> conservative 12 MiB budget.
    return {"budget": 12 << 20, "vmem_limit": None,
            "min_pallas": 32768, "target_block": 2 << 20,
            "prefer_multi_step": False}


def _choose_seq_tile(seq, lanes, itemsize, sub, budget):
    """Largest sequence tile whose bt=1 double-buffered footprint
    (2x x + 2x out + 2x pe = 6 blocks) fits the budget; must divide `seq` and be
    a multiple of the sublane packing (8 f32 / 16 bf16) or equal `seq`."""
    max_ts = budget // (6 * lanes * itemsize)
    if max_ts >= seq:
        return seq
    ts = (max_ts // sub) * sub
    while ts >= sub:
        if seq % ts == 0:
            return ts
        ts -= sub
    return None


def _choose_batch_tile(batch, ts, lanes, itemsize, budget, target_block_bytes):
    """Batch rows per block: enough that each step moves ~target bytes of x,
    subject to the double-buffered footprint (4*bt + 2) * ts * lanes * itemsize
    <= budget, and bt divides batch."""
    row_bytes = ts * lanes * itemsize
    if row_bytes <= 0:
        return 1
    cap = max(1, (budget // row_bytes - 2) // 4)
    want = max(1, -(-target_block_bytes // row_bytes))   # ceil
    bt = int(min(batch, cap, want))
    while bt > 1 and batch % bt != 0:
        bt -= 1
    return max(1, bt)


def _pe_add_kernel(x_ref, pe_ref, o_ref):
    # x_ref / o_ref: (bt, TS, D) tile of bt batch rows.
    # pe_ref: (TS, D) shared tile, broadcast over the leading batch axis.
    o_ref[...] = x_ref[...] + pe_ref[...][None]


def positional_encoding_forward(x, pe, *, seq_tile=None,
                                min_pallas_elements=None,
                                force_pallas=False,
                                donate_x=False):
    """x: (B, S, D); pe: (1, max_len, D).  Returns x + pe[:, :S] (broadcast over B)."""
    B, S, D = x.shape
    assert pe.ndim == 3 and pe.shape[0] == 1 and pe.shape[2] == D and pe.shape[1] >= S

    cfg = _chip_config()
    budget = cfg["budget"]
    if min_pallas_elements is None:
        min_pallas_elements = cfg["min_pallas"]

    # Slice to the live window; cast only if the table was not pre-cast at init.
    pe_slab = pe[0, :S, :]
    if pe_slab.dtype != x.dtype:
        pe_slab = pe_slab.astype(x.dtype)                                 # (S, D)

    # Tiny tensors: pallas_call fixed overhead dwarfs the work -> plain XLA add.
    if x.size < min_pallas_elements and not force_pallas:
        return x + pe_slab[None]

    # Lane-density fold: make the last dim a multiple of 128.  If S is not a
    # multiple of k, zero-pad the sequence so stores are never masked vst.msk.
    k = 128 // math.gcd(D, 128)
    pad_s = 0
    Sp = S
    if k > 1:
        if S % k != 0:
            pad_s = k - (S % k)
            Sp = S + pad_s
            x_p = jnp.pad(x, ((0, 0), (0, pad_s), (0, 0)))
            pe_p = jnp.pad(pe_slab, ((0, pad_s), (0, 0)))
        else:
            x_p, pe_p = x, pe_slab
        x_w = x_p.reshape(B, Sp // k, k * D)
        pe_w = pe_p.reshape(Sp // k, k * D)
    else:
        x_w, pe_w = x, pe_slab
    _, Sw, Dw = x_w.shape

    itemsize = x.dtype.itemsize
    sub = max(8, 32 // itemsize)            # sublane packing: 8 f32, 16 bf16, 32 int8

    ts = seq_tile if seq_tile is not None else _choose_seq_tile(Sw, Dw, itemsize, sub, budget)
    if (ts is None or Sw % ts != 0 or not (ts == Sw or ts % sub == 0)
            or 6 * ts * Dw * itemsize > budget):
        # No VMEM-friendly, evenly-dividing sequence tile (or an explicit tile
        # that blows the scoped-VMEM budget): plain XLA broadcast add.
        return x + pe_slab[None]

    bt = _choose_batch_tile(B, ts, Dw, itemsize, budget, cfg["target_block"])

    seq_tiles = Sw // ts
    if cfg["prefer_multi_step"] and seq_tiles * (B // bt) == 1 and B > 1:
        # v7x megacore: keep >= 2 grid steps so the 2nd TensorCore gets a slice.
        nbt = B // 2
        while nbt > 1 and B % nbt != 0:
            nbt -= 1
        bt = max(1, nbt)
    batch_tiles = B // bt

    # Grid: sequence tiles outer, batch tiles inner.  pe's block index (s, 0) is
    # constant across the inner batch axis, so the shared pe tile is fetched
    # once per sequence tile.  When there is only a single sequence tile, put
    # the batch axis outer so a >1-extent "parallel" axis exists for megacore.
    if seq_tiles == 1 and batch_tiles > 1:
        grid = (batch_tiles, seq_tiles)
        x_map = lambda b, s: (b, s, 0)
        pe_map = lambda b, s: (s, 0)
    else:
        grid = (seq_tiles, batch_tiles)
        x_map = lambda s, b: (b, s, 0)
        pe_map = lambda s, b: (s, 0)

    cp_kwargs = {"dimension_semantics": ("parallel", "parallel")}
    if cfg["vmem_limit"] is not None:
        cp_kwargs["vmem_limit_bytes"] = cfg["vmem_limit"]

    call_kwargs = {}
    if donate_x:
        # Reuse x's HBM buffer for the output (only when x is dead after the add).
        call_kwargs["input_output_aliases"] = {0: 0}

    out_w = pl.pallas_call(
        _pe_add_kernel,
        out_shape=jax.ShapeDtypeStruct(x_w.shape, x.dtype),
        grid_spec=pltpu.PrefetchScalarGridSpec(
            num_scalar_prefetch=0,
            grid=grid,
            in_specs=[
                pl.BlockSpec((bt, ts, Dw), x_map),    # bt batch rows of x
                pl.BlockSpec((ts, Dw), pe_map),       # shared pe tile
            ],
            out_specs=pl.BlockSpec((bt, ts, Dw), x_map),
        ),
        compiler_params=pltpu.CompilerParams(**cp_kwargs),
        **call_kwargs,
    )(x_w, pe_w)

    out = out_w.reshape(B, Sp, D)
    if pad_s:
        out = out[:, :S, :]
    return out


if __name__ == "__main__":
    key = jax.random.PRNGKey(0)

    # 1) Auto-tiled path: multiple batch rows per block (bt > 1), single pe tile.
    B, S, D = 4, 256, 256
    pe = make_positional_encoding(D, max_len=512)
    x = jax.random.normal(key, (B, S, D), dtype=jnp.float32)
    ref = x + pe[:, :S, :]
    out = jax.block_until_ready(positional_encoding_forward(x, pe))
    np.testing.assert_allclose(np.asarray(out), np.asarray(ref), rtol=1e-6, atol=1e-6)

    # 2) Explicit 64-row sequence tile: multi-seq-tile grid, batch-inner pe reuse.
    out_t = jax.block_until_ready(positional_encoding_forward(x, pe, seq_tile=64))
    np.testing.assert_allclose(np.asarray(out_t), np.asarray(ref), rtol=1e-6, atol=1e-6)

    # 3) Tiny module-scale shape (B=2, S=8, D=32): lane-folding branch (D=32 -> 128 lanes).
    B2, S2, D2 = 2, 8, 32
    pe2 = make_positional_encoding(D2, max_len=64)
    x2 = jax.random.normal(jax.random.PRNGKey(0), (B2, S2, D2), dtype=jnp.float32)
    ref2 = x2 + pe2[:, :S2, :]
    out2 = jax.block_until_ready(positional_encoding_forward(x2, pe2, force_pallas=True))
    np.testing.assert_allclose(np.asarray(out2), np.asarray(ref2), rtol=1e-6, atol=1e-6)

    # 4) Lane fold with sequence padding (S=10 not a multiple of k=4): padded,
    #    folded, computed, sliced back.
    B3, S3, D3 = 2, 10, 32
    pe3 = make_positional_encoding(D3, max_len=64)
    x3 = jax.random.normal(jax.random.PRNGKey(0), (B3, S3, D3), dtype=jnp.float32)
    ref3 = x3 + pe3[:, :S3, :]
    out3 = jax.block_until_ready(positional_encoding_forward(x3, pe3, force_pallas=True))
    np.testing.assert_allclose(np.asarray(out3), np.asarray(ref3), rtol=1e-6, atol=1e-6)

    # 5) Size-threshold fallback (plain XLA add) still matches.
    out4 = jax.block_until_ready(positional_encoding_forward(x2, pe2))
    np.testing.assert_allclose(np.asarray(out4), np.asarray(ref2), rtol=1e-6, atol=1e-6)

    print("KERNEL_OK")
</pallas_src>

<mosaic_0001>
module attributes {stable_mosaic.version = 11 : i64} {
  func.func @_pe_add_kernel(%arg0: i32, %arg1: i32, %arg2: memref<4x256x256xf32, #tpu.memory_space<vmem>>, %arg3: memref<256x256xf32, #tpu.memory_space<vmem>>, %arg4: memref<4x256x256xf32, #tpu.memory_space<vmem>>) attributes {dimension_semantics = [#tpu.dimension_semantics<parallel>, #tpu.dimension_semantics<parallel>], iteration_bounds = array<i64: 1, 1>, scalar_prefetch = 0 : i64, scratch_operands = 0 : i64, tpu.core_type = #tpu.core_type<tc>, window_params = [{transform_indices = @transform_0, window_bounds = array<i64: 4, 256, 256>}, {transform_indices = @transform_1, window_bounds = array<i64: 256, 256>}, {transform_indices = @transform_2, window_bounds = array<i64: 4, 256, 256>}]} {
    %c0 = arith.constant 0 : index
    %c0_0 = arith.constant 0 : index
    %c0_1 = arith.constant 0 : index
    %0 = vector.load %arg2[%c0, %c0_0, %c0_1] : memref<4x256x256xf32, #tpu.memory_space<vmem>>, vector<4x256x256xf32>
    %c0_2 = arith.constant 0 : index
    %c0_3 = arith.constant 0 : index
    %1 = vector.load %arg3[%c0_2, %c0_3] : memref<256x256xf32, #tpu.memory_space<vmem>>, vector<256x256xf32>
    %2 = vector.shape_cast %1 : vector<256x256xf32> to vector<1x256x256xf32>
    %3 = vector.broadcast %2 : vector<1x256x256xf32> to vector<4x256x256xf32>
    %4 = arith.addf %0, %3 : vector<4x256x256xf32>
    %c0_4 = arith.constant 0 : index
    %c0_5 = arith.constant 0 : index
    %c0_6 = arith.constant 0 : index
    %5 = vector.load %arg4[%c0_4, %c0_5, %c0_6] : memref<4x256x256xf32, #tpu.memory_space<vmem>>, vector<4x256x256xf32>
    tpu.vector_store %arg4[%c0_4, %c0_5, %c0_6], %4 {strides = array<i32>} : memref<4x256x256xf32, #tpu.memory_space<vmem>>, vector<4x256x256xf32>,
    return
  }
  func.func @transform_0(%arg0: i32, %arg1: i32) -> (i32, i32, i32) {
    %c0_i32 = arith.constant 0 : i32
    %c0_i32_0 = arith.constant 0 : i32
    return %arg1, %arg0, %c0_i32 : i32, i32, i32
  }
  func.func @transform_1(%arg0: i32, %arg1: i32) -> (i32, i32) {
    %c0_i32 = arith.constant 0 : i32
    %c0_i32_0 = arith.constant 0 : i32
    return %arg0, %c0_i32 : i32, i32
  }
  func.func @transform_2(%arg0: i32, %arg1: i32) -> (i32, i32, i32) {
    %c0_i32 = arith.constant 0 : i32
    %c0_i32_0 = arith.constant 0 : i32
    return %arg1, %arg0, %c0_i32 : i32, i32, i32
  }
}

</mosaic_0001>

<llo_original>
// kernel: tpu_custom_call.1
$region0: #{tpu_custom_call.1}
  #allocation0 [shape = 'u32[]', space=smem, size = 0x4, offset = 0x4, fixed_abs, tag = 'smem constant byte address 0x4 - core index']
  #allocation1 [shape = 'u32[144,128]{1,0:T(1,128)}', space=vmem, size = 0x12000, scoped, tag = 'internal scratch']
  %s0 = inlined_call_operand.hbm [shape: f32[4,256,256], index: 0, kind: input, shape index: {}]
  %s1 = inlined_call_operand.hbm [shape: f32[256,256], index: 1, kind: input, shape index: {}]
  %s2 = inlined_call_operand.hbm [shape: f32[4,256,256], index: 2, kind: output, shape index: {}]
  %s3 = sld [smem:[#allocation0]]
  $region26: #{tpu_custom_call.1} parent=0
    _
  %s5 = ssub.s32 1, %s3
  %s6 = scalar_select 0, %s5, %s3
  $region1: #{tpu_custom_call.1} parent=0
    #allocation2 [shape = 'u8[1048576]{0}', space=vmem, size = 0x100000, scoped, tag = 'input window, operand 0, single buffered']
    #allocation3 [shape = 's32[1]{0}', space=sflag, size = 0x4, scoped, tag = 'scoped memory for tpu_custom_call.1']
    #allocation4 [shape = 's32[1]{0}', space=sflag, size = 0x4, scoped, tag = 'scoped memory for tpu_custom_call.1']
    #allocation5 [shape = 'u8[262144]{0}', space=vmem, size = 0x40000, scoped, tag = 'input window, operand 1, single buffered']
    #allocation6 [shape = 's32[1]{0}', space=sflag, size = 0x4, scoped, tag = 'scoped memory for tpu_custom_call.1']
    #allocation7 [shape = 'u8[1048576]{0}', space=vmem, size = 0x100000, scoped, tag = 'output window, operand 0, single buffered']
    %7 = vsyncpa [#allocation3], 0
    %8 = vsyncpa [#allocation6], 0
    %9 = vsyncpa [#allocation4], 0
    // Predicated region
    $region2: #{tpu_custom_call.1} parent=1 // pred_check
      _
    $region3: #{tpu_custom_call.1} parent=1 // pred_check_branch
      %11 = sbr.rel (0) target = $region5
    $region4: #{tpu_custom_call.1} parent=1 // pred_region
      %s13 = ssub.s32 32768, 32768
      %14 = vsyncadd [#allocation3], %s13
      %s15 = sshll.u32 [#allocation2], 4
      %s16 = int_to_ptr.vmem [resolvable:$true] %s15
      %21 = dma.hbm_to_vmem [thread:$0]  %s0, 32768, %s16, [#allocation3], 256, 256, 16
    $region5: #{tpu_custom_call.1} parent=1 // pred_fallthru
      _
    // Predicated region
    $region6: #{tpu_custom_call.1} parent=1 // pred_check
      _
    $region7: #{tpu_custom_call.1} parent=1 // pred_check_branch
      %23 = sbr.rel (0) target = $region9
    $region8: #{tpu_custom_call.1} parent=1 // pred_region
      %s25 = ssub.s32 8192, 8192
      %26 = vsyncadd [#allocation6], %s25
      %s27 = sshll.u32 [#allocation5], 4
      %s28 = int_to_ptr.vmem [resolvable:$true] %s27
      %33 = dma.hbm_to_vmem [thread:$0]  %s1, 8192, %s28, [#allocation6], 256, 256, 16
    $region9: #{tpu_custom_call.1} parent=1 // pred_fallthru
      _
    // Predicated region
    $region10: #{tpu_custom_call.1} parent=1 // pred_check
      _
    $region11: #{tpu_custom_call.1} parent=1 // pred_check_branch
      %35 = sbr.rel (0) target = $region13
    $region12: #{tpu_custom_call.1} parent=1 // pred_region
      %36 = dma.done [#allocation3], 32768
    $region13: #{tpu_custom_call.1} parent=1 // pred_fallthru
      _
    // Predicated region
    $region14: #{tpu_custom_call.1} parent=1 // pred_check
      _
    $region15: #{tpu_custom_call.1} parent=1 // pred_check_branch
      %38 = sbr.rel (0) target = $region17
    $region16: #{tpu_custom_call.1} parent=1 // pred_region
      %39 = dma.done [#allocation6], 8192
    $region17: #{tpu_custom_call.1} parent=1 // pred_fallthru
      _
    %v40 = vld [vmem:[#allocation2] sm:$0xff]
    %v41 = vld [vmem:[#allocation2 + $0x8] sm:$0xff]
    %v42 = vld [vmem:[#allocation2 + $0x10] sm:$0xff]
    %v43 = vld [vmem:[#allocation2 + $0x18] sm:$0xff]
    %v44 = vld [vmem:[#allocation2 + $0x20] sm:$0xff]
    %v45 = vld [vmem:[#allocation2 + $0x28] sm:$0xff]
    %v46 = vld [vmem:[#allocation2 + $0x30] sm:$0xff]
    %v47 = vld [vmem:[#allocation2 + $0x38] sm:$0xff]
    %v48 = vld [vmem:[#allocation2 + $0x40] sm:$0xff]
    %v49 = vld [vmem:[#allocation2 + $0x48] sm:$0xff]
    %v50 = vld [vmem:[#allocation2 + $0x50] sm:$0xff]
    %v51 = vld [vmem:[#allocation2 + $0x58] sm:$0xff]
    %v52 = vld [vmem:[#allocation2 + $0x60] sm:$0xff]
    %v53 = vld [vmem:[#allocation2 + $0x68] sm:$0xff]
    %v54 = vld [vmem:[#allocation2 + $0x70] sm:$0xff]
    %v55 = vld [vmem:[#allocation2 + $0x78] sm:$0xff]
    %v56 = vld [vmem:[#allocation2 + $0x80] sm:$0xff]
    %v57 = vld [vmem:[#allocation2 + $0x88] sm:$0xff]
    %v58 = vld [vmem:[#allocation2 + $0x90] sm:$0xff]
    %v59 = vld [vmem:[#allocation2 + $0x98] sm:$0xff]
    %v60 = vld [vmem:[#allocation2 + $0xa0] sm:$0xff]
    %v61 = vld [vmem:[#allocation2 + $0xa8] sm:$0xff]
    %v62 = vld [vmem:[#allocation2 + $0xb0] sm:$0xff]
    %v63 = vld [vmem:[#allocation2 + $0xb8] sm:$0xff]
    %v64 = vld [vmem:[#allocation2 + $0xc0] sm:$0xff]
    %v65 = vld [vmem:[#allocation2 + $0xc8] sm:$0xff]
    %v66 = vld [vmem:[#allocation2 + $0xd0] sm:$0xff]
    %v67 = vld [vmem:[#allocation2 + $0xd8] sm:$0xff]
    %v68 = vld [vmem:[#allocation2 + $0xe0] sm:$0xff]
    %v69 = vld [vmem:[#allocation2 + $0xe8] sm:$0xff]
    %v70 = vld [vmem:[#allocation2 + $0xf0] sm:$0xff]
    %v71 = vld [vmem:[#allocation2 + $0xf8] sm:$0xff]
    %v72 = vld [vmem:[#allocation2 + $0x100] sm:$0xff]
    %v73 = vld [vmem:[#allocation2 + $0x108] sm:$0xff]
    %v74 = vld [vmem:[#allocation2 + $0x110] sm:$0xff]
    %v75 = vld [vmem:[#allocation2 + $0x118] sm:$0xff]
    %v76 = vld [vmem:[#allocation2 + $0x120] sm:$0xff]
    %v77 = vld [vmem:[#allocation2 + $0x128] sm:$0xff]
    %v78 = vld [vmem:[#allocation2 + $0x130] sm:$0xff]
    %v79 = vld [vmem:[#allocation2 + $0x138] sm:$0xff]
    %v80 = vld [vmem:[#allocation2 + $0x140] sm:$0xff]
    %v81 = vld [vmem:[#allocation2 + $0x148] sm:$0xff]
    %v82 = vld [vmem:[#allocation2 + $0x150] sm:$0xff]
    %v83 = vld [vmem:[#allocation2 + $0x158] sm:$0xff]
    %v84 = vld [vmem:[#allocation2 + $0x160] sm:$0xff]
    %v85 = vld [vmem:[#allocation2 + $0x168] sm:$0xff]
    %v86 = vld [vmem:[#allocation2 + $0x170] sm:$0xff]
    %v87 = vld [vmem:[#allocation2 + $0x178] sm:$0xff]
    %v88 = vld [vmem:[#allocation2 + $0x180] sm:$0xff]
    %v89 = vld [vmem:[#allocation2 + $0x188] sm:$0xff]
    %v90 = vld [vmem:[#allocation2 + $0x190] sm:$0xff]
    %v91 = vld [vmem:[#allocation2 + $0x198] sm:$0xff]
    %v92 = vld [vmem:[#allocation2 + $0x1a0] sm:$0xff]
    %v93 = vld [vmem:[#allocation2 + $0x1a8] sm:$0xff]
    %v94 = vld [vmem:[#allocation2 + $0x1b0] sm:$0xff]
    %v95 = vld [vmem:[#allocation2 + $0x1b8] sm:$0xff]
    %v96 = vld [vmem:[#allocation2 + $0x1c0] sm:$0xff]
    %v97 = vld [vmem:[#allocation2 + $0x1c8] sm:$0xff]
    %v98 = vld [vmem:[#allocation2 + $0x1d0] sm:$0xff]
    %v99 = vld [vmem:[#allocation2 + $0x1d8] sm:$0xff]
    %v100 = vld [vmem:[#allocation2 + $0x1e0] sm:$0xff]
    %v101 = vld [vmem:[#allocation2 + $0x1e8] sm:$0xff]
    %v102 = vld [vmem:[#allocation2 + $0x1f0] sm:$0xff]
    %v103 = vld [vmem:[#allocation2 + $0x1f8] sm:$0xff]
    %v104 = vld [vmem:[#allocation2 + $0x200] sm:$0xff]
    %v105 = vld [vmem:[#allocation2 + $0x208] sm:$0xff]
    %v106 = vld [vmem:[#allocation2 + $0x210] sm:$0xff]
    %v107 = vld [vmem:[#allocation2 + $0x218] sm:$0xff]
    %v108 = vld [vmem:[#allocation2 + $0x220] sm:$0xff]
    %v109 = vld [vmem:[#allocation2 + $0x228] sm:$0xff]
    %v110 = vld [vmem:[#allocation2 + $0x230] sm:$0xff]
    %v111 = vld [vmem:[#allocation2 + $0x238] sm:$0xff]
    %v112 = vld [vmem:[#allocation2 + $0x240] sm:$0xff]
    %v113 = vld [vmem:[#allocation2 + $0x248] sm:$0xff]
    %v114 = vld [vmem:[#allocation2 + $0x250] sm:$0xff]
    %v115 = vld [vmem:[#allocation2 + $0x258] sm:$0xff]
    %v116 = vld [vmem:[#allocation2 + $0x260] sm:$0xff]
    %v117 = vld [vmem:[#allocation2 + $0x268] sm:$0xff]
    %v118 = vld [vmem:[#allocation2 + $0x270] sm:$0xff]
    %v119 = vld [vmem:[#allocation2 + $0x278] sm:$0xff]
    %v120 = vld [vmem:[#allocation2 + $0x280] sm:$0xff]
    %v121 = vld [vmem:[#allocation2 + $0x288] sm:$0xff]
    %v122 = vld [vmem:[#allocation2 + $0x290] sm:$0xff]
    %v123 = vld [vmem:[#allocation2 + $0x298] sm:$0xff]
    %v124 = vld [vmem:[#allocation2 + $0x2a0] sm:$0xff]
    %v125 = vld [vmem:[#allocation2 + $0x2a8] sm:$0xff]
    %v126 = vld [vmem:[#allocation2 + $0x2b0] sm:$0xff]
    %v127 = vld [vmem:[#allocation2 + $0x2b8] sm:$0xff]
    %v128 = vld [vmem:[#allocation2 + $0x2c0] sm:$0xff]
    %v129 = vld [vmem:[#allocation2 + $0x2c8] sm:$0xff]
    %v130 = vld [vmem:[#allocation2 + $0x2d0] sm:$0xff]
    %v131 = vld [vmem:[#allocation2 + $0x2d8] sm:$0xff]
    %v132 = vld [vmem:[#allocation2 + $0x2e0] sm:$0xff]
    %v133 = vld [vmem:[#allocation2 + $0x2e8] sm:$0xff]
    %v134 = vld [vmem:[#allocation2 + $0x2f0] sm:$0xff]
    %v135 = vld [vmem:[#allocation2 + $0x2f8] sm:$0xff]
    %v136 = vld [vmem:[#allocation2 + $0x300] sm:$0xff]
    %v137 = vld [vmem:[#allocation2 + $0x308] sm:$0xff]
    %v138 = vld [vmem:[#allocation2 + $0x310] sm:$0xff]
    %v139 = vld [vmem:[#allocation2 + $0x318] sm:$0xff]
    %v140 = vld [vmem:[#allocation2 + $0x320] sm:$0xff]
    %v141 = vld [vmem:[#allocation2 + $0x328] sm:$0xff]
    %v142 = vld [vmem:[#allocation2 + $0x330] sm:$0xff]
    %v143 = vld [vmem:[#allocation2 + $0x338] sm:$0xff]
    %v144 = vld [vmem:[#allocation2 + $0x340] sm:$0xff]
    %v145 = vld [vmem:[#allocation2 + $0x348] sm:$0xff]
    %v146 = vld [vmem:[#allocation2 + $0x350] sm:$0xff]
    %v147 = vld [vmem:[#allocation2 + $0x358] sm:$0xff]
    %v148 = vld [vmem:[#allocation2 + $0x360] sm:$0xff]
    %v149 = vld [vmem:[#allocation2 + $0x368] sm:$0xff]
    %v150 = vld [vmem:[#allocation2 + $0x370] sm:$0xff]
    %v151 = vld [vmem:[#allocation2 + $0x378] sm:$0xff]
    %v152 = vld [vmem:[#allocation2 + $0x380] sm:$0xff]
    %v153 = vld [vmem:[#allocation2 + $0x388] sm:$0xff]
    %v154 = vld [vmem:[#allocation2 + $0x390] sm:$0xff]
    %v155 = vld [vmem:[#allocation2 + $0x398] sm:$0xff]
    %v156 = vld [vmem:[#allocation2 + $0x3a0] sm:$0xff]
    %v157 = vld [vmem:[#allocation2 + $0x3a8] sm:$0xff]
    %v158 = vld [vmem:[#allocation2 + $0x3b0] sm:$0xff]
    %v159 = vld [vmem:[#allocation2 + $0x3b8] sm:$0xff]
    %v160 = vld [vmem:[#allocation2 + $0x3c0] sm:$0xff]
    %v161 = vld [vmem:[#allocation2 + $0x3c8] sm:$0xff]
    %v162 = vld [vmem:[#allocation2 + $0x3d0] sm:$0xff]
    %v163 = vld [vmem:[#allocation2 + $0x3d8] sm:$0xff]
    %v164 = vld [vmem:[#allocation2 + $0x3e0] sm:$0xff]
    %v165 = vld [vmem:[#allocation2 + $0x3e8] sm:$0xff]
    %v166 = vld [vmem:[#allocation2 + $0x3f0] sm:$0xff]
    %v167 = vld [vmem:[#allocation2 + $0x3f8] sm:$0xff]
    %v168 = vld [vmem:[#allocation2 + $0x400] sm:$0xff]
    %v169 = vld [vmem:[#allocation2 + $0x408] sm:$0xff]
    %v170 = vld [vmem:[#allocation2 + $0x410] sm:$0xff]
    %v171 = vld [vmem:[#allocation2 + $0x418] sm:$0xff]
    %v172 = vld [vmem:[#allocation2 + $0x420] sm:$0xff]
    %v173 = vld [vmem:[#allocation2 + $0x428] sm:$0xff]
    %v174 = vld [vmem:[#allocation2 + $0x430] sm:$0xff]
    %v175 = vld [vmem:[#allocation2 + $0x438] sm:$0xff]
    %v176 = vld [vmem:[#allocation2 + $0x440] sm:$0xff]
    %v177 = vld [vmem:[#allocation2 + $0x448] sm:$0xff]
    %v178 = vld [vmem:[#allocation2 + $0x450] sm:$0xff]
    %v179 = vld [vmem:[#allocation2 + $0x458] sm:$0xff]
    %v180 = vld [vmem:[#allocation2 + $0x460] sm:$0xff]
    %v181 = vld [vmem:[#allocation2 + $0x468] sm:$0xff]
    %v182 = vld [vmem:[#allocation2 + $0x470] sm:$0xff]
    %v183 = vld [vmem:[#allocation2 + $0x478] sm:$0xff]
    %v184 = vld [vmem:[#allocation2 + $0x480] sm:$0xff]
    %v185 = vld [vmem:[#allocation2 + $0x488] sm:$0xff]
    %v186 = vld [vmem:[#allocation2 + $0x490] sm:$0xff]
    %v187 = vld [vmem:[#allocation2 + $0x498] sm:$0xff]
    %v188 = vld [vmem:[#allocation2 + $0x4a0] sm:$0xff]
    %v189 = vld [vmem:[#allocation2 + $0x4a8] sm:$0xff]
    %v190 = vld [vmem:[#allocation2 + $0x4b0] sm:$0xff]
    %v191 = vld [vmem:[#allocation2 + $0x4b8] sm:$0xff]
    %v192 = vld [vmem:[#allocation2 + $0x4c0] sm:$0xff]
    %v193 = vld [vmem:[#allocation2 + $0x4c8] sm:$0xff]
    %v194 = vld [vmem:[#allocation2 + $0x4d0] sm:$0xff]
    %v195 = vld [vmem:[#allocation2 + $0x4d8] sm:$0xff]
    %v196 = vld [vmem:[#allocation2 + $0x4e0] sm:$0xff]
    %v197 = vld [vmem:[#allocation2 + $0x4e8] sm:$0xff]
    %v198 = vld [vmem:[#allocation2 + $0x4f0] sm:$0xff]
    %v199 = vld [vmem:[#allocation2 + $0x4f8] sm:$0xff]
    %v200 = vld [vmem:[#allocation2 + $0x500] sm:$0xff]
    %v201 = vld [vmem:[#allocation2 + $0x508] sm:$0xff]
    %v202 = vld [vmem:[#allocation2 + $0x510] sm:$0xff]
    %v203 = vld [vmem:[#allocation2 + $0x518] sm:$0xff]
    %v204 = vld [vmem:[#allocation2 + $0x520] sm:$0xff]
    %v205 = vld [vmem:[#allocation2 + $0x528] sm:$0xff]
    %v206 = vld [vmem:[#allocation2 + $0x530] sm:$0xff]
    %v207 = vld [vmem:[#allocation2 + $0x538] sm:$0xff]
    %v208 = vld [vmem:[#allocation2 + $0x540] sm:$0xff]
    %v209 = vld [vmem:[#allocation2 + $0x548] sm:$0xff]
    %v210 = vld [vmem:[#allocation2 + $0x550] sm:$0xff]
    %v211 = vld [vmem:[#allocation2 + $0x558] sm:$0xff]
    %v212 = vld [vmem:[#allocation2 + $0x560] sm:$0xff]
    %v213 = vld [vmem:[#allocation2 + $0x568] sm:$0xff]
    %v214 = vld [vmem:[#allocation2 + $0x570] sm:$0xff]
    %v215 = vld [vmem:[#allocation2 + $0x578] sm:$0xff]
    %v216 = vld [vmem:[#allocation2 + $0x580] sm:$0xff]
    %v217 = vld [vmem:[#allocation2 + $0x588] sm:$0xff]
    %v218 = vld [vmem:[#allocation2 + $0x590] sm:$0xff]
    %v219 = vld [vmem:[#allocation2 + $0x598] sm:$0xff]
    %v220 = vld [vmem:[#allocation2 + $0x5a0] sm:$0xff]
    %v221 = vld [vmem:[#allocation2 + $0x5a8] sm:$0xff]
    %v222 = vld [vmem:[#allocation2 + $0x5b0] sm:$0xff]
    %v223 = vld [vmem:[#allocation2 + $0x5b8] sm:$0xff]
    %v224 = vld [vmem:[#allocation2 + $0x5c0] sm:$0xff]
    %v225 = vld [vmem:[#allocation2 + $0x5c8] sm:$0xff]
    %v226 = vld [vmem:[#allocation2 + $0x5d0] sm:$0xff]
    %v227 = vld [vmem:[#allocation2 + $0x5d8] sm:$0xff]
    %v228 = vld [vmem:[#allocation2 + $0x5e0] sm:$0xff]
    %v229 = vld [vmem:[#allocation2 + $0x5e8] sm:$0xff]
    %v230 = vld [vmem:[#allocation2 + $0x5f0] sm:$0xff]
    %v231 = vld [vmem:[#allocation2 + $0x5f8] sm:$0xff]
    %v232 = vld [vmem:[#allocation2 + $0x600] sm:$0xff]
    %v233 = vld [vmem:[#allocation2 + $0x608] sm:$0xff]
    %v234 = vld [vmem:[#allocation2 + $0x610] sm:$0xff]
    %v235 = vld [vmem:[#allocation2 + $0x618] sm:$0xff]
    %v236 = vld [vmem:[#allocation2 + $0x620] sm:$0xff]
    %v237 = vld [vmem:[#allocation2 + $0x628] sm:$0xff]
    %v238 = vld [vmem:[#allocation2 + $0x630] sm:$0xff]
    %v239 = vld [vmem:[#allocation2 + $0x638] sm:$0xff]
    %v240 = vld [vmem:[#allocation2 + $0x640] sm:$0xff]
    %v241 = vld [vmem:[#allocation2 + $0x648] sm:$0xff]
    %v242 = vld [vmem:[#allocation2 + $0x650] sm:$0xff]
    %v243 = vld [vmem:[#allocation2 + $0x658] sm:$0xff]
    %v244 = vld [vmem:[#allocation2 + $0x660] sm:$0xff]
    %v245 = vld [vmem:[#allocation2 + $0x668] sm:$0xff]
    %v246 = vld [vmem:[#allocation2 + $0x670] sm:$0xff]
    %v247 = vld [vmem:[#allocation2 + $0x678] sm:$0xff]
    %v248 = vld [vmem:[#allocation2 + $0x680] sm:$0xff]
    %v249 = vld [vmem:[#allocation2 + $0x688] sm:$0xff]
    %v250 = vld [vmem:[#allocation2 + $0x690] sm:$0xff]
    %v251 = vld [vmem:[#allocation2 + $0x698] sm:$0xff]
    %v252 = vld [vmem:[#allocation2 + $0x6a0] sm:$0xff]
    %v253 = vld [vmem:[#allocation2 + $0x6a8] sm:$0xff]
    %v254 = vld [vmem:[#allocation2 + $0x6b0] sm:$0xff]
    %v255 = vld [vmem:[#allocation2 + $0x6b8] sm:$0xff]
    %v256 = vld [vmem:[#allocation2 + $0x6c0] sm:$0xff]
    %v257 = vld [vmem:[#allocation2 + $0x6c8] sm:$0xff]
    %v258 = vld [vmem:[#allocation2 + $0x6d0] sm:$0xff]
    %v259 = vld [vmem:[#allocation2 + $0x6d8] sm:$0xff]
    %v260 = vld [vmem:[#allocation2 + $0x6e0] sm:$0xff]
    %v261 = vld [vmem:[#allocation2 + $0x6e8] sm:$0xff]
    %v262 = vld [vmem:[#allocation2 + $0x6f0] sm:$0xff]
    %v263 = vld [vmem:[#allocation2 + $0x6f8] sm:$0xff]
    %v264 = vld [vmem:[#allocation2 + $0x700] sm:$0xff]
    %v265 = vld [vmem:[#allocation2 + $0x708] sm:$0xff]
    %v266 = vld [vmem:[#allocation2 + $0x710] sm:$0xff]
    %v267 = vld [vmem:[#allocation2 + $0x718] sm:$0xff]
    %v268 = vld [vmem:[#allocation2 + $0x720] sm:$0xff]
    %v269 = vld [vmem:[#allocation2 + $0x728] sm:$0xff]
    %v270 = vld [vmem:[#allocation2 + $0x730] sm:$0xff]
    %v271 = vld [vmem:[#allocation2 + $0x738] sm:$0xff]
    %v272 = vld [vmem:[#allocation2 + $0x740] sm:$0xff]
    %v273 = vld [vmem:[#allocation2 + $0x748] sm:$0xff]
    %v274 = vld [vmem:[#allocation2 + $0x750] sm:$0xff]
    %v275 = vld [vmem:[#allocation2 + $0x758] sm:$0xff]
    %v276 = vld [vmem:[#allocation2 + $0x760] sm:$0xff]
    %v277 = vld [vmem:[#allocation2 + $0x768] sm:$0xff]
    %v278 = vld [vmem:[#allocation2 + $0x770] sm:$0xff]
    %v279 = vld [vmem:[#allocation2 + $0x778] sm:$0xff]
    %v280 = vld [vmem:[#allocation2 + $0x780] sm:$0xff]
    %v281 = vld [vmem:[#allocation2 + $0x788] sm:$0xff]
    %v282 = vld [vmem:[#allocation2 + $0x790] sm:$0xff]
    %v283 = vld [vmem:[#allocation2 + $0x798] sm:$0xff]
    %v284 = vld [vmem:[#allocation2 + $0x7a0] sm:$0xff]
    %v285 = vld [vmem:[#allocation2 + $0x7a8] sm:$0xff]
    %v286 = vld [vmem:[#allocation2 + $0x7b0] sm:$0xff]
    %v287 = vld [vmem:[#allocation2 + $0x7b8] sm:$0xff]
    %v288 = vld [vmem:[#allocation2 + $0x7c0] sm:$0xff]
    %v289 = vld [vmem:[#allocation2 + $0x7c8] sm:$0xff]
    %v290 = vld [vmem:[#allocation2 + $0x7d0] sm:$0xff]
    %v291 = vld [vmem:[#allocation2 + $0x7d8] sm:$0xff]
    %v292 = vld [vmem:[#allocation2 + $0x7e0] sm:$0xff]
    %v293 = vld [vmem:[#allocation2 + $0x7e8] sm:$0xff]
    %v294 = vld [vmem:[#allocation2 + $0x7f0] sm:$0xff]
    %v295 = vld [vmem:[#allocation2 + $0x7f8] sm:$0xff]
    %v296 = vld [vmem:[#allocation5] sm:$0xff]
    %v297 = vld [vmem:[#allocation5 + $0x8] sm:$0xff]
    %v298 = vld [vmem:[#allocation5 + $0x10] sm:$0xff]
    %v299 = vld [vmem:[#allocation5 + $0x18] sm:$0xff]
    %v300 = vld [vmem:[#allocation5 + $0x20] sm:$0xff]
    %v301 = vld [vmem:[#allocation5 + $0x28] sm:$0xff]
    %v302 = vld [vmem:[#allocation5 + $0x30] sm:$0xff]
    %v303 = vld [vmem:[#allocation5 + $0x38] sm:$0xff]
    %v304 = vld [vmem:[#allocation5 + $0x40] sm:$0xff]
    %v305 = vld [vmem:[#allocation5 + $0x48] sm:$0xff]
    %v306 = vld [vmem:[#allocation5 + $0x50] sm:$0xff]
    %v307 = vld [vmem:[#allocation5 + $0x58] sm:$0xff]
    %v308 = vld [vmem:[#allocation5 + $0x60] sm:$0xff]
    %v309 = vld [vmem:[#allocation5 + $0x68] sm:$0xff]
    %v310 = vld [vmem:[#allocation5 + $0x70] sm:$0xff]
    %v311 = vld [vmem:[#allocation5 + $0x78] sm:$0xff]
    %v312 = vld [vmem:[#allocation5 + $0x80] sm:$0xff]
    %v313 = vld [vmem:[#allocation5 + $0x88] sm:$0xff]
    %v314 = vld [vmem:[#allocation5 + $0x90] sm:$0xff]
    %v315 = vld [vmem:[#allocation5 + $0x98] sm:$0xff]
    %v316 = vld [vmem:[#allocation5 + $0xa0] sm:$0xff]
    %v317 = vld [vmem:[#allocation5 + $0xa8] sm:$0xff]
    %v318 = vld [vmem:[#allocation5 + $0xb0] sm:$0xff]
    %v319 = vld [vmem:[#allocation5 + $0xb8] sm:$0xff]
    %v320 = vld [vmem:[#allocation5 + $0xc0] sm:$0xff]
    %v321 = vld [vmem:[#allocation5 + $0xc8] sm:$0xff]
    %v322 = vld [vmem:[#allocation5 + $0xd0] sm:$0xff]
    %v323 = vld [vmem:[#allocation5 + $0xd8] sm:$0xff]
    %v324 = vld [vmem:[#allocation5 + $0xe0] sm:$0xff]
    %v325 = vld [vmem:[#allocation5 + $0xe8] sm:$0xff]
    %v326 = vld [vmem:[#allocation5 + $0xf0] sm:$0xff]
    %v327 = vld [vmem:[#allocation5 + $0xf8] sm:$0xff]
    %v328 = vld [vmem:[#allocation5 + $0x100] sm:$0xff]
    %v329 = vld [vmem:[#allocation5 + $0x108] sm:$0xff]
    %v330 = vld [vmem:[#allocation5 + $0x110] sm:$0xff]
    %v331 = vld [vmem:[#allocation5 + $0x118] sm:$0xff]
    %v332 = vld [vmem:[#allocation5 + $0x120] sm:$0xff]
    %v333 = vld [vmem:[#allocation5 + $0x128] sm:$0xff]
    %v334 = vld [vmem:[#allocation5 + $0x130] sm:$0xff]
    %v335 = vld [vmem:[#allocation5 + $0x138] sm:$0xff]
    %v336 = vld [vmem:[#allocation5 + $0x140] sm:$0xff]
    %v337 = vld [vmem:[#allocation5 + $0x148] sm:$0xff]
    %v338 = vld [vmem:[#allocation5 + $0x150] sm:$0xff]
    %v339 = vld [vmem:[#allocation5 + $0x158] sm:$0xff]
    %v340 = vld [vmem:[#allocation5 + $0x160] sm:$0xff]
    %v341 = vld [vmem:[#allocation5 + $0x168] sm:$0xff]
    %v342 = vld [vmem:[#allocation5 + $0x170] sm:$0xff]
    %v343 = vld [vmem:[#allocation5 + $0x178] sm:$0xff]
    %v344 = vld [vmem:[#allocation5 + $0x180] sm:$0xff]
    %v345 = vld [vmem:[#allocation5 + $0x188] sm:$0xff]
    %v346 = vld [vmem:[#allocation5 + $0x190] sm:$0xff]
    %v347 = vld [vmem:[#allocation5 + $0x198] sm:$0xff]
    %v348 = vld [vmem:[#allocation5 + $0x1a0] sm:$0xff]
    %v349 = vld [vmem:[#allocation5 + $0x1a8] sm:$0xff]
    %v350 = vld [vmem:[#allocation5 + $0x1b0] sm:$0xff]
    %v351 = vld [vmem:[#allocation5 + $0x1b8] sm:$0xff]
    %v352 = vld [vmem:[#allocation5 + $0x1c0] sm:$0xff]
    %v353 = vld [vmem:[#allocation5 + $0x1c8] sm:$0xff]
    %v354 = vld [vmem:[#allocation5 + $0x1d0] sm:$0xff]
    %v355 = vld [vmem:[#allocation5 + $0x1d8] sm:$0xff]
    %v356 = vld [vmem:[#allocation5 + $0x1e0] sm:$0xff]
    %v357 = vld [vmem:[#allocation5 + $0x1e8] sm:$0xff]
    %v358 = vld [vmem:[#allocation5 + $0x1f0] sm:$0xff]
    %v359 = vld [vmem:[#allocation5 + $0x1f8] sm:$0xff]
    %v360 = vadd.f32 %v40, %v296
    %v361 = vadd.f32 %v41, %v297
    %v362 = vadd.f32 %v42, %v298
    %v363 = vadd.f32 %v43, %v299
    %v364 = vadd.f32 %v44, %v300
    %v365 = vadd.f32 %v45, %v301
    %v366 = vadd.f32 %v46, %v302
    %v367 = vadd.f32 %v47, %v303
    %v368 = vadd.f32 %v48, %v304
    %v369 = vadd.f32 %v49, %v305
    %v370 = vadd.f32 %v50, %v306
    %v371 = vadd.f32 %v51, %v307
    %v372 = vadd.f32 %v52, %v308
    %v373 = vadd.f32 %v53, %v309
    %v374 = vadd.f32 %v54, %v310
    %v375 = vadd.f32 %v55, %v311
    %v376 = vadd.f32 %v56, %v312
    %v377 = vadd.f32 %v57, %v313
    %v378 = vadd.f32 %v58, %v314
    %v379 = vadd.f32 %v59, %v315
    %v380 = vadd.f32 %v60, %v316
    %v381 = vadd.f32 %v61, %v317
    %v382 = vadd.f32 %v62, %v318
    %v383 = vadd.f32 %v63, %v319
    %v384 = vadd.f32 %v64, %v320
    %v385 = vadd.f32 %v65, %v321
    %v386 = vadd.f32 %v66, %v322
    %v387 = vadd.f32 %v67, %v323
    %v388 = vadd.f32 %v68, %v324
    %v389 = vadd.f32 %v69, %v325
    %v390 = vadd.f32 %v70, %v326
    %v391 = vadd.f32 %v71, %v327
    %v392 = vadd.f32 %v72, %v328
    %v393 = vadd.f32 %v73, %v329
    %v394 = vadd.f32 %v74, %v330
    %v395 = vadd.f32 %v75, %v331
    %v396 = vadd.f32 %v76, %v332
    %v397 = vadd.f32 %v77, %v333
    %v398 = vadd.f32 %v78, %v334
    %v399 = vadd.f32 %v79, %v335
    %v400 = vadd.f32 %v80, %v336
    %v401 = vadd.f32 %v81, %v337
    %v402 = vadd.f32 %v82, %v338
    %v403 = vadd.f32 %v83, %v339
    %v404 = vadd.f32 %v84, %v340
    %v405 = vadd.f32 %v85, %v341
    %v406 = vadd.f32 %v86, %v342
    %v407 = vadd.f32 %v87, %v343
    %v408 = vadd.f32 %v88, %v344
    %v409 = vadd.f32 %v89, %v345
    %v410 = vadd.f32 %v90, %v346
    %v411 = vadd.f32 %v91, %v347
    %v412 = vadd.f32 %v92, %v348
    %v413 = vadd.f32 %v93, %v349
    %v414 = vadd.f32 %v94, %v350
    %v415 = vadd.f32 %v95, %v351
    %v416 = vadd.f32 %v96, %v352
    %v417 = vadd.f32 %v97, %v353
    %v418 = vadd.f32 %v98, %v354
    %v419 = vadd.f32 %v99, %v355
    %v420 = vadd.f32 %v100, %v356
    %v421 = vadd.f32 %v101, %v357
    %v422 = vadd.f32 %v102, %v358
    %v423 = vadd.f32 %v103, %v359
    %v424 = vadd.f32 %v104, %v296
    %v425 = vadd.f32 %v105, %v297
    %v426 = vadd.f32 %v106, %v298
    %v427 = vadd.f32 %v107, %v299
    %v428 = vadd.f32 %v108, %v300
    %v429 = vadd.f32 %v109, %v301
    %v430 = vadd.f32 %v110, %v302
    %v431 = vadd.f32 %v111, %v303
    %v432 = vadd.f32 %v112, %v304
    %v433 = vadd.f32 %v113, %v305
    %v434 = vadd.f32 %v114, %v306
    %v435 = vadd.f32 %v115, %v307
    %v436 = vadd.f32 %v116, %v308
    %v437 = vadd.f32 %v117, %v309
    %v438 = vadd.f32 %v118, %v310
    %v439 = vadd.f32 %v119, %v311
    %v440 = vadd.f32 %v120, %v312
    %v441 = vadd.f32 %v121, %v313
    %v442 = vadd.f32 %v122, %v314
    %v443 = vadd.f32 %v123, %v315
    %v444 = vadd.f32 %v124, %v316
    %v445 = vadd.f32 %v125, %v317
    %v446 = vadd.f32 %v126, %v318
    %v447 = vadd.f32 %v127, %v319
    %v448 = vadd.f32 %v128, %v320
    %v449 = vadd.f32 %v129, %v321
    %v450 = vadd.f32 %v130, %v322
    %v451 = vadd.f32 %v131, %v323
    %v452 = vadd.f32 %v132, %v324
    %v453 = vadd.f32 %v133, %v325
    %v454 = vadd.f32 %v134, %v326
    %v455 = vadd.f32 %v135, %v327
    %v456 = vadd.f32 %v136, %v328
    %v457 = vadd.f32 %v137, %v329
    %v458 = vadd.f32 %v138, %v330
    %v459 = vadd.f32 %v139, %v331
    %v460 = vadd.f32 %v140, %v332
    %v461 = vadd.f32 %v141, %v333
    %v462 = vadd.f32 %v142, %v334
    %v463 = vadd.f32 %v143, %v335
    %v464 = vadd.f32 %v144, %v336
    %v465 = vadd.f32 %v145, %v337
    %v466 = vadd.f32 %v146, %v338
    %v467 = vadd.f32 %v147, %v339
    %v468 = vadd.f32 %v148, %v340
    %v469 = vadd.f32 %v149, %v341
    %v470 = vadd.f32 %v150, %v342
    %v471 = vadd.f32 %v151, %v343
    %v472 = vadd.f32 %v152, %v344
    %v473 = vadd.f32 %v153, %v345
    %v474 = vadd.f32 %v154, %v346
    %v475 = vadd.f32 %v155, %v347
    %v476 = vadd.f32 %v156, %v348
    %v477 = vadd.f32 %v157, %v349
    %v478 = vadd.f32 %v158, %v350
    %v479 = vadd.f32 %v159, %v351
    %v480 = vadd.f32 %v160, %v352
    %v481 = vadd.f32 %v161, %v353
    %v482 = vadd.f32 %v162, %v354
    %v483 = vadd.f32 %v163, %v355
    %v484 = vadd.f32 %v164, %v356
    %v485 = vadd.f32 %v165, %v357
    %v486 = vadd.f32 %v166, %v358
    %v487 = vadd.f32 %v167, %v359
    %v488 = vadd.f32 %v168, %v296
    %v489 = vadd.f32 %v169, %v297
    %v490 = vadd.f32 %v170, %v298
    %v491 = vadd.f32 %v171, %v299
    %v492 = vadd.f32 %v172, %v300
    %v493 = vadd.f32 %v173, %v301
    %v494 = vadd.f32 %v174, %v302
    %v495 = vadd.f32 %v175, %v303
    %v496 = vadd.f32 %v176, %v304
    %v497 = vadd.f32 %v177, %v305
    %v498 = vadd.f32 %v178, %v306
    %v499 = vadd.f32 %v179, %v307
    %v500 = vadd.f32 %v180, %v308
    %v501 = vadd.f32 %v181, %v309
    %v502 = vadd.f32 %v182, %v310
    %v503 = vadd.f32 %v183, %v311
    %v504 = vadd.f32 %v184, %v312
    %v505 = vadd.f32 %v185, %v313
    %v506 = vadd.f32 %v186, %v314
    %v507 = vadd.f32 %v187, %v315
    %v508 = vadd.f32 %v188, %v316
    %v509 = vadd.f32 %v189, %v317
    %v510 = vadd.f32 %v190, %v318
    %v511 = vadd.f32 %v191, %v319
    %v512 = vadd.f32 %v192, %v320
    %v513 = vadd.f32 %v193, %v321
    %v514 = vadd.f32 %v194, %v322
    %v515 = vadd.f32 %v195, %v323
    %v516 = vadd.f32 %v196, %v324
    %v517 = vadd.f32 %v197, %v325
    %v518 = vadd.f32 %v198, %v326
    %v519 = vadd.f32 %v199, %v327
    %v520 = vadd.f32 %v200, %v328
    %v521 = vadd.f32 %v201, %v329
    %v522 = vadd.f32 %v202, %v330
    %v523 = vadd.f32 %v203, %v331
    %v524 = vadd.f32 %v204, %v332
    %v525 = vadd.f32 %v205, %v333
    %v526 = vadd.f32 %v206, %v334
    %v527 = vadd.f32 %v207, %v335
    %v528 = vadd.f32 %v208, %v336
    %v529 = vadd.f32 %v209, %v337
    %v530 = vadd.f32 %v210, %v338
    %v531 = vadd.f32 %v211, %v339
    %v532 = vadd.f32 %v212, %v340
    %v533 = vadd.f32 %v213, %v341
    %v534 = vadd.f32 %v214, %v342
    %v535 = vadd.f32 %v215, %v343
    %v536 = vadd.f32 %v216, %v344
    %v537 = vadd.f32 %v217, %v345
    %v538 = vadd.f32 %v218, %v346
    %v539 = vadd.f32 %v219, %v347
    %v540 = vadd.f32 %v220, %v348
    %v541 = vadd.f32 %v221, %v349
    %v542 = vadd.f32 %v222, %v350
    %v543 = vadd.f32 %v223, %v351
    %v544 = vadd.f32 %v224, %v352
    %v545 = vadd.f32 %v225, %v353
    %v546 = vadd.f32 %v226, %v354
    %v547 = vadd.f32 %v227, %v355
    %v548 = vadd.f32 %v228, %v356
    %v549 = vadd.f32 %v229, %v357
    %v550 = vadd.f32 %v230, %v358
    %v551 = vadd.f32 %v231, %v359
    %v552 = vadd.f32 %v232, %v296
    %v553 = vadd.f32 %v233, %v297
    %v554 = vadd.f32 %v234, %v298
    %v555 = vadd.f32 %v235, %v299
    %v556 = vadd.f32 %v236, %v300
    %v557 = vadd.f32 %v237, %v301
    %v558 = vadd.f32 %v238, %v302
    %v559 = vadd.f32 %v239, %v303
    %v560 = vadd.f32 %v240, %v304
    %v561 = vadd.f32 %v241, %v305
    %v562 = vadd.f32 %v242, %v306
    %v563 = vadd.f32 %v243, %v307
    %v564 = vadd.f32 %v244, %v308
    %v565 = vadd.f32 %v245, %v309
    %v566 = vadd.f32 %v246, %v310
    %v567 = vadd.f32 %v247, %v311
    %v568 = vadd.f32 %v248, %v312
    %v569 = vadd.f32 %v249, %v313
    %v570 = vadd.f32 %v250, %v314
    %v571 = vadd.f32 %v251, %v315
    %v572 = vadd.f32 %v252, %v316
    %v573 = vadd.f32 %v253, %v317
    %v574 = vadd.f32 %v254, %v318
    %v575 = vadd.f32 %v255, %v319
    %v576 = vadd.f32 %v256, %v320
    %v577 = vadd.f32 %v257, %v321
    %v578 = vadd.f32 %v258, %v322
    %v579 = vadd.f32 %v259, %v323
    %v580 = vadd.f32 %v260, %v324
    %v581 = vadd.f32 %v261, %v325
    %v582 = vadd.f32 %v262, %v326
    %v583 = vadd.f32 %v263, %v327
    %v584 = vadd.f32 %v264, %v328
    %v585 = vadd.f32 %v265, %v329
    %v586 = vadd.f32 %v266, %v330
    %v587 = vadd.f32 %v267, %v331
    %v588 = vadd.f32 %v268, %v332
    %v589 = vadd.f32 %v269, %v333
    %v590 = vadd.f32 %v270, %v334
    %v591 = vadd.f32 %v271, %v335
    %v592 = vadd.f32 %v272, %v336
    %v593 = vadd.f32 %v273, %v337
    %v594 = vadd.f32 %v274, %v338
    %v595 = vadd.f32 %v275, %v339
    %v596 = vadd.f32 %v276, %v340
    %v597 = vadd.f32 %v277, %v341
    %v598 = vadd.f32 %v278, %v342
    %v599 = vadd.f32 %v279, %v343
    %v600 = vadd.f32 %v280, %v344
    %v601 = vadd.f32 %v281, %v345
    %v602 = vadd.f32 %v282, %v346
    %v603 = vadd.f32 %v283, %v347
    %v604 = vadd.f32 %v284, %v348
    %v605 = vadd.f32 %v285, %v349
    %v606 = vadd.f32 %v286, %v350
    %v607 = vadd.f32 %v287, %v351
    %v608 = vadd.f32 %v288, %v352
    %v609 = vadd.f32 %v289, %v353
    %v610 = vadd.f32 %v290, %v354
    %v611 = vadd.f32 %v291, %v355
    %v612 = vadd.f32 %v292, %v356
    %v613 = vadd.f32 %v293, %v357
    %v614 = vadd.f32 %v294, %v358
    %v615 = vadd.f32 %v295, %v359
    %616 = vst [vmem:[#allocation7] sm:$0xff] %v360
    %617 = vst [vmem:[#allocation7 + $0x8] sm:$0xff] %v361
    %618 = vst [vmem:[#allocation7 + $0x10] sm:$0xff] %v362
    %619 = vst [vmem:[#allocation7 + $0x18] sm:$0xff] %v363
    %620 = vst [vmem:[#allocation7 + $0x20] sm:$0xff] %v364
    %621 = vst [vmem:[#allocation7 + $0x28] sm:$0xff] %v365
    %622 = vst [vmem:[#allocation7 + $0x30] sm:$0xff] %v366
    %623 = vst [vmem:[#allocation7 + $0x38] sm:$0xff] %v367
    %624 = vst [vmem:[#allocation7 + $0x40] sm:$0xff] %v368
    %625 = vst [vmem:[#allocation7 + $0x48] sm:$0xff] %v369
    %626 = vst [vmem:[#allocation7 + $0x50] sm:$0xff] %v370
    %627 = vst [vmem:[#allocation7 + $0x58] sm:$0xff] %v371
    %628 = vst [vmem:[#allocation7 + $0x60] sm:$0xff] %v372
    %629 = vst [vmem:[#allocation7 + $0x68] sm:$0xff] %v373
    %630 = vst [vmem:[#allocation7 + $0x70] sm:$0xff] %v374
    %631 = vst [vmem:[#allocation7 + $0x78] sm:$0xff] %v375
    %632 = vst [vmem:[#allocation7 + $0x80] sm:$0xff] %v376
    %633 = vst [vmem:[#allocation7 + $0x88] sm:$0xff] %v377
    %634 = vst [vmem:[#allocation7 + $0x90] sm:$0xff] %v378
    %635 = vst [vmem:[#allocation7 + $0x98] sm:$0xff] %v379
    %636 = vst [vmem:[#allocation7 + $0xa0] sm:$0xff] %v380
    %637 = vst [vmem:[#allocation7 + $0xa8] sm:$0xff] %v381
    %638 = vst [vmem:[#allocation7 + $0xb0] sm:$0xff] %v382
    %639 = vst [vmem:[#allocation7 + $0xb8] sm:$0xff] %v383
    %640 = vst [vmem:[#allocation7 + $0xc0] sm:$0xff] %v384
    %641 = vst [vmem:[#allocation7 + $0xc8] sm:$0xff] %v385
    %642 = vst [vmem:[#allocation7 + $0xd0] sm:$0xff] %v386
    %643 = vst [vmem:[#allocation7 + $0xd8] sm:$0xff] %v387
    %644 = vst [vmem:[#allocation7 + $0xe0] sm:$0xff] %v388
    %645 = vst [vmem:[#allocation7 + $0xe8] sm:$0xff] %v389
    %646 = vst [vmem:[#allocation7 + $0xf0] sm:$0xff] %v390
    %647 = vst [vmem:[#allocation7 + $0xf8] sm:$0xff] %v391
    %648 = vst [vmem:[#allocation7 + $0x100] sm:$0xff] %v392
    %649 = vst [vmem:[#allocation7 + $0x108] sm:$0xff] %v393
    %650 = vst [vmem:[#allocation7 + $0x110] sm:$0xff] %v394
    %651 = vst [vmem:[#allocation7 + $0x118] sm:$0xff] %v395
    %652 = vst [vmem:[#allocation7 + $0x120] sm:$0xff] %v396
    %653 = vst [vmem:[#allocation7 + $0x128] sm:$0xff] %v397
    %654 = vst [vmem:[#allocation7 + $0x130] sm:$0xff] %v398
    %655 = vst [vmem:[#allocation7 + $0x138] sm:$0xff] %v399
    %656 = vst [vmem:[#allocation7 + $0x140] sm:$0xff] %v400
    %657 = vst [vmem:[#allocation7 + $0x148] sm:$0xff] %v401
    %658 = vst [vmem:[#allocation7 + $0x150] sm:$0xff] %v402
    %659 = vst [vmem:[#allocation7 + $0x158] sm:$0xff] %v403
    %660 = vst [vmem:[#allocation7 + $0x160] sm:$0xff] %v404
    %661 = vst [vmem:[#allocation7 + $0x168] sm:$0xff] %v405
    %662 = vst [vmem:[#allocation7 + $0x170] sm:$0xff] %v406
    %663 = vst [vmem:[#allocation7 + $0x178] sm:$0xff] %v407
    %664 = vst [vmem:[#allocation7 + $0x180] sm:$0xff] %v408
    %665 = vst [vmem:[#allocation7 + $0x188] sm:$0xff] %v409
    %666 = vst [vmem:[#allocation7 + $0x190] sm:$0xff] %v410
    %667 = vst [vmem:[#allocation7 + $0x198] sm:$0xff] %v411
    %668 = vst [vmem:[#allocation7 + $0x1a0] sm:$0xff] %v412
    %669 = vst [vmem:[#allocation7 + $0x1a8] sm:$0xff] %v413
    %670 = vst [vmem:[#allocation7 + $0x1b0] sm:$0xff] %v414
    %671 = vst [vmem:[#allocation7 + $0x1b8] sm:$0xff] %v415
    %672 = vst [vmem:[#allocation7 + $0x1c0] sm:$0xff] %v416
    %673 = vst [vmem:[#allocation7 + $0x1c8] sm:$0xff] %v417
    %674 = vst [vmem:[#allocation7 + $0x1d0] sm:$0xff] %v418
    %675 = vst [vmem:[#allocation7 + $0x1d8] sm:$0xff] %v419
    %676 = vst [vmem:[#allocation7 + $0x1e0] sm:$0xff] %v420
    %677 = vst [vmem:[#allocation7 + $0x1e8] sm:$0xff] %v421
    %678 = vst [vmem:[#allocation7 + $0x1f0] sm:$0xff] %v422
    %679 = vst [vmem:[#allocation7 + $0x1f8] sm:$0xff] %v423
    %680 = vst [vmem:[#allocation7 + $0x200] sm:$0xff] %v424
    %681 = vst [vmem:[#allocation7 + $0x208] sm:$0xff] %v425
    %682 = vst [vmem:[#allocation7 + $0x210] sm:$0xff] %v426
    %683 = vst [vmem:[#allocation7 + $0x218] sm:$0xff] %v427
    %684 = vst [vmem:[#allocation7 + $0x220] sm:$0xff] %v428
    %685 = vst [vmem:[#allocation7 + $0x228] sm:$0xff] %v429
    %686 = vst [vmem:[#allocation7 + $0x230] sm:$0xff] %v430
    %687 = vst [vmem:[#allocation7 + $0x238] sm:$0xff] %v431
    %688 = vst [vmem:[#allocation7 + $0x240] sm:$0xff] %v432
    %689 = vst [vmem:[#allocation7 + $0x248] sm:$0xff] %v433
    %690 = vst [vmem:[#allocation7 + $0x250] sm:$0xff] %v434
    %691 = vst [vmem:[#allocation7 + $0x258] sm:$0xff] %v435
    %692 = vst [vmem:[#allocation7 + $0x260] sm:$0xff] %v436
    %693 = vst [vmem:[#allocation7 + $0x268] sm:$0xff] %v437
    %694 = vst [vmem:[#allocation7 + $0x270] sm:$0xff] %v438
    %695 = vst [vmem:[#allocation7 + $0x278] sm:$0xff] %v439
    %696 = vst [vmem:[#allocation7 + $0x280] sm:$0xff] %v440
    %697 = vst [vmem:[#allocation7 + $0x288] sm:$0xff] %v441
    %698 = vst [vmem:[#allocation7 + $0x290] sm:$0xff] %v442
    %699 = vst [vmem:[#allocation7 + $0x298] sm:$0xff] %v443
    %700 = vst [vmem:[#allocation7 + $0x2a0] sm:$0xff] %v444
    %701 = vst [vmem:[#allocation7 + $0x2a8] sm:$0xff] %v445
    %702 = vst [vmem:[#allocation7 + $0x2b0] sm:$0xff] %v446
    %703 = vst [vmem:[#allocation7 + $0x2b8] sm:$0xff] %v447
    %704 = vst [vmem:[#allocation7 + $0x2c0] sm:$0xff] %v448
    %705 = vst [vmem:[#allocation7 + $0x2c8] sm:$0xff] %v449
    %706 = vst [vmem:[#allocation7 + $0x2d0] sm:$0xff] %v450
    %707 = vst [vmem:[#allocation7 + $0x2d8] sm:$0xff] %v451
    %708 = vst [vmem:[#allocation7 + $0x2e0] sm:$0xff] %v452
    %709 = vst [vmem:[#allocation7 + $0x2e8] sm:$0xff] %v453
    %710 = vst [vmem:[#allocation7 + $0x2f0] sm:$0xff] %v454
    %711 = vst [vmem:[#allocation7 + $0x2f8] sm:$0xff] %v455
    %712 = vst [vmem:[#allocation7 + $0x300] sm:$0xff] %v456
    %713 = vst [vmem:[#allocation7 + $0x308] sm:$0xff] %v457
    %714 = vst [vmem:[#allocation7 + $0x310] sm:$0xff] %v458
    %715 = vst [vmem:[#allocation7 + $0x318] sm:$0xff] %v459
    %716 = vst [vmem:[#allocation7 + $0x320] sm:$0xff] %v460
    %717 = vst [vmem:[#allocation7 + $0x328] sm:$0xff] %v461
    %718 = vst [vmem:[#allocation7 + $0x330] sm:$0xff] %v462
    %719 = vst [vmem:[#allocation7 + $0x338] sm:$0xff] %v463
    %720 = vst [vmem:[#allocation7 + $0x340] sm:$0xff] %v464
    %721 = vst [vmem:[#allocation7 + $0x348] sm:$0xff] %v465
    %722 = vst [vmem:[#allocation7 + $0x350] sm:$0xff] %v466
    %723 = vst [vmem:[#allocation7 + $0x358] sm:$0xff] %v467
    %724 = vst [vmem:[#allocation7 + $0x360] sm:$0xff] %v468
    %725 = vst [vmem:[#allocation7 + $0x368] sm:$0xff] %v469
    %726 = vst [vmem:[#allocation7 + $0x370] sm:$0xff] %v470
    %727 = vst [vmem:[#allocation7 + $0x378] sm:$0xff] %v471
    %728 = vst [vmem:[#allocation7 + $0x380] sm:$0xff] %v472
    %729 = vst [vmem:[#allocation7 + $0x388] sm:$0xff] %v473
    %730 = vst [vmem:[#allocation7 + $0x390] sm:$0xff] %v474
    %731 = vst [vmem:[#allocation7 + $0x398] sm:$0xff] %v475
    %732 = vst [vmem:[#allocation7 + $0x3a0] sm:$0xff] %v476
    %733 = vst [vmem:[#allocation7 + $0x3a8] sm:$0xff] %v477
    %734 = vst [vmem:[#allocation7 + $0x3b0] sm:$0xff] %v478
    %735 = vst [vmem:[#allocation7 + $0x3b8] sm:$0xff] %v479
    %736 = vst [vmem:[#allocation7 + $0x3c0] sm:$0xff] %v480
    %737 = vst [vmem:[#allocation7 + $0x3c8] sm:$0xff] %v481
    %738 = vst [vmem:[#allocation7 + $0x3d0] sm:$0xff] %v482
    %739 = vst [vmem:[#allocation7 + $0x3d8] sm:$0xff] %v483
    %740 = vst [vmem:[#allocation7 + $0x3e0] sm:$0xff] %v484
    %741 = vst [vmem:[#allocation7 + $0x3e8] sm:$0xff] %v485
    %742 = vst [vmem:[#allocation7 + $0x3f0] sm:$0xff] %v486
    %743 = vst [vmem:[#allocation7 + $0x3f8] sm:$0xff] %v487
    %744 = vst [vmem:[#allocation7 + $0x400] sm:$0xff] %v488
    %745 = vst [vmem:[#allocation7 + $0x408] sm:$0xff] %v489
    %746 = vst [vmem:[#allocation7 + $0x410] sm:$0xff] %v490
    %747 = vst [vmem:[#allocation7 + $0x418] sm:$0xff] %v491
    %748 = vst [vmem:[#allocation7 + $0x420] sm:$0xff] %v492
    %749 = vst [vmem:[#allocation7 + $0x428] sm:$0xff] %v493
    %750 = vst [vmem:[#allocation7 + $0x430] sm:$0xff] %v494
    %751 = vst [vmem:[#allocation7 + $0x438] sm:$0xff] %v495
    %752 = vst [vmem:[#allocation7 + $0x440] sm:$0xff] %v496
    %753 = vst [vmem:[#allocation7 + $0x448] sm:$0xff] %v497
    %754 = vst [vmem:[#allocation7 + $0x450] sm:$0xff] %v498
    %755 = vst [vmem:[#allocation7 + $0x458] sm:$0xff] %v499
    %756 = vst [vmem:[#allocation7 + $0x460] sm:$0xff] %v500
    %757 = vst [vmem:[#allocation7 + $0x468] sm:$0xff] %v501
    %758 = vst [vmem:[#allocation7 + $0x470] sm:$0xff] %v502
    %759 = vst [vmem:[#allocation7 + $0x478] sm:$0xff] %v503
    %760 = vst [vmem:[#allocation7 + $0x480] sm:$0xff] %v504
    %761 = vst [vmem:[#allocation7 + $0x488] sm:$0xff] %v505
    %762 = vst [vmem:[#allocation7 + $0x490] sm:$0xff] %v506
    %763 = vst [vmem:[#allocation7 + $0x498] sm:$0xff] %v507
    %764 = vst [vmem:[#allocation7 + $0x4a0] sm:$0xff] %v508
    %765 = vst [vmem:[#allocation7 + $0x4a8] sm:$0xff] %v509
    %766 = vst [vmem:[#allocation7 + $0x4b0] sm:$0xff] %v510
    %767 = vst [vmem:[#allocation7 + $0x4b8] sm:$0xff] %v511
    %768 = vst [vmem:[#allocation7 + $0x4c0] sm:$0xff] %v512
    %769 = vst [vmem:[#allocation7 + $0x4c8] sm:$0xff] %v513
    %770 = vst [vmem:[#allocation7 + $0x4d0] sm:$0xff] %v514
    %771 = vst [vmem:[#allocation7 + $0x4d8] sm:$0xff] %v515
    %772 = vst [vmem:[#allocation7 + $0x4e0] sm:$0xff] %v516
    %773 = vst [vmem:[#allocation7 + $0x4e8] sm:$0xff] %v517
    %774 = vst [vmem:[#allocation7 + $0x4f0] sm:$0xff] %v518
    %775 = vst [vmem:[#allocation7 + $0x4f8] sm:$0xff] %v519
    %776 = vst [vmem:[#allocation7 + $0x500] sm:$0xff] %v520
    %777 = vst [vmem:[#allocation7 + $0x508] sm:$0xff] %v521
    %778 = vst [vmem:[#allocation7 + $0x510] sm:$0xff] %v522
    %779 = vst [vmem:[#allocation7 + $0x518] sm:$0xff] %v523
    %780 = vst [vmem:[#allocation7 + $0x520] sm:$0xff] %v524
    %781 = vst [vmem:[#allocation7 + $0x528] sm:$0xff] %v525
    %782 = vst [vmem:[#allocation7 + $0x530] sm:$0xff] %v526
    %783 = vst [vmem:[#allocation7 + $0x538] sm:$0xff] %v527
    %784 = vst [vmem:[#allocation7 + $0x540] sm:$0xff] %v528
    %785 = vst [vmem:[#allocation7 + $0x548] sm:$0xff] %v529
    %786 = vst [vmem:[#allocation7 + $0x550] sm:$0xff] %v530
    %787 = vst [vmem:[#allocation7 + $0x558] sm:$0xff] %v531
    %788 = vst [vmem:[#allocation7 + $0x560] sm:$0xff] %v532
    %789 = vst [vmem:[#allocation7 + $0x568] sm:$0xff] %v533
    %790 = vst [vmem:[#allocation7 + $0x570] sm:$0xff] %v534
    %791 = vst [vmem:[#allocation7 + $0x578] sm:$0xff] %v535
    %792 = vst [vmem:[#allocation7 + $0x580] sm:$0xff] %v536
    %793 = vst [vmem:[#allocation7 + $0x588] sm:$0xff] %v537
    %794 = vst [vmem:[#allocation7 + $0x590] sm:$0xff] %v538
    %795 = vst [vmem:[#allocation7 + $0x598] sm:$0xff] %v539
    %796 = vst [vmem:[#allocation7 + $0x5a0] sm:$0xff] %v540
    %797 = vst [vmem:[#allocation7 + $0x5a8] sm:$0xff] %v541
    %798 = vst [vmem:[#allocation7 + $0x5b0] sm:$0xff] %v542
    %799 = vst [vmem:[#allocation7 + $0x5b8] sm:$0xff] %v543
    %800 = vst [vmem:[#allocation7 + $0x5c0] sm:$0xff] %v544
    %801 = vst [vmem:[#allocation7 + $0x5c8] sm:$0xff] %v545
    %802 = vst [vmem:[#allocation7 + $0x5d0] sm:$0xff] %v546
    %803 = vst [vmem:[#allocation7 + $0x5d8] sm:$0xff] %v547
    %804 = vst [vmem:[#allocation7 + $0x5e0] sm:$0xff] %v548
    %805 = vst [vmem:[#allocation7 + $0x5e8] sm:$0xff] %v549
    %806 = vst [vmem:[#allocation7 + $0x5f0] sm:$0xff] %v550
    %807 = vst [vmem:[#allocation7 + $0x5f8] sm:$0xff] %v551
    %808 = vst [vmem:[#allocation7 + $0x600] sm:$0xff] %v552
    %809 = vst [vmem:[#allocation7 + $0x608] sm:$0xff] %v553
    %810 = vst [vmem:[#allocation7 + $0x610] sm:$0xff] %v554
    %811 = vst [vmem:[#allocation7 + $0x618] sm:$0xff] %v555
    %812 = vst [vmem:[#allocation7 + $0x620] sm:$0xff] %v556
    %813 = vst [vmem:[#allocation7 + $0x628] sm:$0xff] %v557
    %814 = vst [vmem:[#allocation7 + $0x630] sm:$0xff] %v558
    %815 = vst [vmem:[#allocation7 + $0x638] sm:$0xff] %v559
    %816 = vst [vmem:[#allocation7 + $0x640] sm:$0xff] %v560
    %817 = vst [vmem:[#allocation7 + $0x648] sm:$0xff] %v561
    %818 = vst [vmem:[#allocation7 + $0x650] sm:$0xff] %v562
    %819 = vst [vmem:[#allocation7 + $0x658] sm:$0xff] %v563
    %820 = vst [vmem:[#allocation7 + $0x660] sm:$0xff] %v564
    %821 = vst [vmem:[#allocation7 + $0x668] sm:$0xff] %v565
    %822 = vst [vmem:[#allocation7 + $0x670] sm:$0xff] %v566
    %823 = vst [vmem:[#allocation7 + $0x678] sm:$0xff] %v567
    %824 = vst [vmem:[#allocation7 + $0x680] sm:$0xff] %v568
    %825 = vst [vmem:[#allocation7 + $0x688] sm:$0xff] %v569
    %826 = vst [vmem:[#allocation7 + $0x690] sm:$0xff] %v570
    %827 = vst [vmem:[#allocation7 + $0x698] sm:$0xff] %v571
    %828 = vst [vmem:[#allocation7 + $0x6a0] sm:$0xff] %v572
    %829 = vst [vmem:[#allocation7 + $0x6a8] sm:$0xff] %v573
    %830 = vst [vmem:[#allocation7 + $0x6b0] sm:$0xff] %v574
    %831 = vst [vmem:[#allocation7 + $0x6b8] sm:$0xff] %v575
    %832 = vst [vmem:[#allocation7 + $0x6c0] sm:$0xff] %v576
    %833 = vst [vmem:[#allocation7 + $0x6c8] sm:$0xff] %v577
    %834 = vst [vmem:[#allocation7 + $0x6d0] sm:$0xff] %v578
    %835 = vst [vmem:[#allocation7 + $0x6d8] sm:$0xff] %v579
    %836 = vst [vmem:[#allocation7 + $0x6e0] sm:$0xff] %v580
    %837 = vst [vmem:[#allocation7 + $0x6e8] sm:$0xff] %v581
    %838 = vst [vmem:[#allocation7 + $0x6f0] sm:$0xff] %v582
    %839 = vst [vmem:[#allocation7 + $0x6f8] sm:$0xff] %v583
    %840 = vst [vmem:[#allocation7 + $0x700] sm:$0xff] %v584
    %841 = vst [vmem:[#allocation7 + $0x708] sm:$0xff] %v585
    %842 = vst [vmem:[#allocation7 + $0x710] sm:$0xff] %v586
    %843 = vst [vmem:[#allocation7 + $0x718] sm:$0xff] %v587
    %844 = vst [vmem:[#allocation7 + $0x720] sm:$0xff] %v588
    %845 = vst [vmem:[#allocation7 + $0x728] sm:$0xff] %v589
    %846 = vst [vmem:[#allocation7 + $0x730] sm:$0xff] %v590
    %847 = vst [vmem:[#allocation7 + $0x738] sm:$0xff] %v591
    %848 = vst [vmem:[#allocation7 + $0x740] sm:$0xff] %v592
    %849 = vst [vmem:[#allocation7 + $0x748] sm:$0xff] %v593
    %850 = vst [vmem:[#allocation7 + $0x750] sm:$0xff] %v594
    %851 = vst [vmem:[#allocation7 + $0x758] sm:$0xff] %v595
    %852 = vst [vmem:[#allocation7 + $0x760] sm:$0xff] %v596
    %853 = vst [vmem:[#allocation7 + $0x768] sm:$0xff] %v597
    %854 = vst [vmem:[#allocation7 + $0x770] sm:$0xff] %v598
    %855 = vst [vmem:[#allocation7 + $0x778] sm:$0xff] %v599
    %856 = vst [vmem:[#allocation7 + $0x780] sm:$0xff] %v600
    %857 = vst [vmem:[#allocation7 + $0x788] sm:$0xff] %v601
    %858 = vst [vmem:[#allocation7 + $0x790] sm:$0xff] %v602
    %859 = vst [vmem:[#allocation7 + $0x798] sm:$0xff] %v603
    %860 = vst [vmem:[#allocation7 + $0x7a0] sm:$0xff] %v604
    %861 = vst [vmem:[#allocation7 + $0x7a8] sm:$0xff] %v605
    %862 = vst [vmem:[#allocation7 + $0x7b0] sm:$0xff] %v606
    %863 = vst [vmem:[#allocation7 + $0x7b8] sm:$0xff] %v607
    %864 = vst [vmem:[#allocation7 + $0x7c0] sm:$0xff] %v608
    %865 = vst [vmem:[#allocation7 + $0x7c8] sm:$0xff] %v609
    %866 = vst [vmem:[#allocation7 + $0x7d0] sm:$0xff] %v610
    %867 = vst [vmem:[#allocation7 + $0x7d8] sm:$0xff] %v611
    %868 = vst [vmem:[#allocation7 + $0x7e0] sm:$0xff] %v612
    %869 = vst [vmem:[#allocation7 + $0x7e8] sm:$0xff] %v613
    %870 = vst [vmem:[#allocation7 + $0x7f0] sm:$0xff] %v614
    %871 = vst [vmem:[#allocation7 + $0x7f8] sm:$0xff] %v615
    // Predicated region
    $region18: #{tpu_custom_call.1} parent=1 // pred_check
      _
    $region19: #{tpu_custom_call.1} parent=1 // pred_check_branch
      %873 = sbr.rel (0) target = $region21
    $region20: #{tpu_custom_call.1} parent=1 // pred_region
      %s875 = ssub.s32 32768, 32768
      %876 = vsyncadd [#allocation4], %s875
      %s877 = sshll.u32 [#allocation7], 4
      %s878 = int_to_ptr.vmem [resolvable:$true] %s877
      %883 = dma.vmem_to_hbm [thread:$0]  %s878, 32768, %s2, [#allocation4], 256, 256, 16
    $region21: #{tpu_custom_call.1} parent=1 // pred_fallthru
      _
    // Predicated region
    $region22: #{tpu_custom_call.1} parent=1 // pred_check
      _
    $region23: #{tpu_custom_call.1} parent=1 // pred_check_branch
      %885 = sbr.rel (0) target = $region25
    $region24: #{tpu_custom_call.1} parent=1 // pred_region
      %886 = dma.done [#allocation4], 32768
    $region25: #{tpu_custom_call.1} parent=1 // pred_fallthru
      _
    %887 = vsyncpa [#allocation3], 1
    %888 = vsyncpa [#allocation6], 1
    %889 = vsyncpa [#allocation4], 1

</llo_original>
